<compile_context>
chip_gen: v7x
topology: tpu7x:2x2x1
jax: 0.10.0
libtpu: 0.0.40
codegen_flags: <defaults>
</compile_context>

<pallas_src>
import functools

import jax
import jax.numpy as jnp
import numpy as np
from jax.experimental import pallas as pl
from jax.experimental.pallas import tpu as pltpu


def _round_up(x, m):
    return ((x + m - 1) // m) * m


def _mxu_prefers_bf16():
    """bf16 MXU inputs (f32 accumulate) pay off on v6e/v7x; keep f32 elsewhere."""
    try:
        kind = jax.devices()[0].device_kind.lower()
    except Exception:
        return False
    return any(tag in kind for tag in ("v6", "v7"))


def rnn_label_kernel(x_ref, w_ih_t_ref, w_hh_t_ref, b_ref,
                     w_lab_t_ref, b_lab_ref, out_ref):
    """Single-invocation RNN recurrence + label head.

    x_ref:       (T*Bp, Ip)  time-major rows, batch padded to 8 sublanes
    w_ih_t_ref:  (Ip, Hp)    (f32 or bf16)
    w_hh_t_ref:  (Hp, Hp)    (f32 or bf16)
    b_ref:       (1, Hp)     b_ih + b_hh (pre-added, f32)
    w_lab_t_ref: (Hp, Op)    (f32 or bf16)
    b_lab_ref:   (1, Op)     (f32)
    out_ref:     (Bp, Op)    lane-dense logits of the final hidden state (f32)
    """
    Bp = out_ref.shape[0]
    T = x_ref.shape[0] // Bp
    mm_dtype = w_hh_t_ref.dtype          # MXU input dtype (f32 or bf16)

    # Hoisted, time-independent input projection: one batched MXU call covers
    # all T steps, with the (pre-summed) bias folded in.  f32 accumulate.
    xp = (jnp.dot(x_ref[...], w_ih_t_ref[...],
                  preferred_element_type=jnp.float32)
          + b_ref[...])                                   # (T*Bp, Hp) f32

    # t = 0 peeled: h_0 == 0, so the first step is just tanh of the projection.
    h = jnp.tanh(xp[0:Bp, :])                             # (Bp, Hp) f32

    # Sequential recurrence: one (Bp,Hp)x(Hp,Hp) matmul + tanh per step.
    # T is small and static, so a fully unrolled Python loop gives the LLO
    # scheduler full visibility.  w_hh is read from the VMEM ref inside each
    # dot (not held live across the unrolled loop).
    for t in range(1, T):
        h = jnp.tanh(xp[t * Bp:(t + 1) * Bp, :]
                     + jnp.dot(h.astype(mm_dtype), w_hh_t_ref[...],
                               preferred_element_type=jnp.float32))

    logits = (jnp.dot(h.astype(mm_dtype), w_lab_t_ref[...],
                      preferred_element_type=jnp.float32)
              + b_lab_ref[...])
    out_ref[...] = logits.astype(out_ref.dtype)


def prepare_rnn_params(w_ih, w_hh, b_ih, b_hh, w_lab, b_lab,
                       mxu_dtype=jnp.float32):
    """One-time weight preparation (pad / transpose / bias-fold / dtype cast).

    Padding is exact: padded hidden columns stay 0 through the recurrence
    (zero weight columns / zero bias), padded batch rows never mix with real
    rows and are sliced off in the forward.
    """
    H, I = w_ih.shape
    O = w_lab.shape[0]
    Ip = _round_up(I, 128)
    Hp = _round_up(H, 128)
    Op = _round_up(O, 128)
    f32 = jnp.float32
    return {
        "w_ih_t": jnp.pad(w_ih.astype(f32).T,
                          ((0, Ip - I), (0, Hp - H))).astype(mxu_dtype),
        "w_hh_t": jnp.pad(w_hh.astype(f32).T,
                          ((0, Hp - H), (0, Hp - H))).astype(mxu_dtype),
        "b": jnp.pad((b_ih + b_hh).astype(f32), (0, Hp - H)).reshape(1, Hp),
        "w_lab_t": jnp.pad(w_lab.astype(f32).T,
                           ((0, Hp - H), (0, Op - O))).astype(mxu_dtype),
        "b_lab": jnp.pad(b_lab.astype(f32), (0, Op - O)).reshape(1, Op),
    }


@functools.partial(jax.jit, static_argnames=("output_size",))
def rnn_label_forward(x, params, *, output_size):
    """x: (T, B, I), params from prepare_rnn_params.  Returns (1, B, O)."""
    T, B, I = x.shape
    Ip, Hp = params["w_ih_t"].shape
    Op = params["w_lab_t"].shape[1]
    Bp = _round_up(B, 8)                  # sublane alignment
    mm_dtype = params["w_hh_t"].dtype

    # Only per-call data prep: pad x to lane-dense (T*Bp, Ip) rows.
    x_p = (jnp.pad(x.astype(jnp.float32),
                   ((0, 0), (0, Bp - B), (0, Ip - I)))
           .reshape(T * Bp, Ip).astype(mm_dtype))

    itemsize = jnp.dtype(mm_dtype).itemsize
    bytes_accessed = (T * Bp * Ip * itemsize          # x
                      + Ip * Hp * itemsize            # w_ih_t
                      + Hp * Hp * itemsize            # w_hh_t
                      + Hp * 4                        # b
                      + Hp * Op * itemsize            # w_lab_t
                      + Op * 4                        # b_lab
                      + Bp * Op * 4)                  # out
    cost = pl.CostEstimate(
        flops=2 * (T * Bp * Ip * Hp + (T - 1) * Bp * Hp * Hp + Bp * Hp * Op),
        transcendentals=T * Bp * Hp,
        bytes_accessed=int(bytes_accessed))

    out_p = pl.pallas_call(
        rnn_label_kernel,
        out_shape=jax.ShapeDtypeStruct((Bp, Op), jnp.float32),
        in_specs=[pl.BlockSpec(memory_space=pltpu.MemorySpace.VMEM)
                  for _ in range(6)],
        out_specs=pl.BlockSpec(memory_space=pltpu.MemorySpace.VMEM),
        cost_estimate=cost,
    )(x_p, params["w_ih_t"], params["w_hh_t"], params["b"],
      params["w_lab_t"], params["b_lab"])

    # Strip padding; reshape to nn.RNN's h_n -> Linear output layout (1, B, O).
    return out_p[:B, :output_size][None, :, :]


def rnn_label_reference(x, w_ih, w_hh, b_ih, b_hh, w_lab, b_lab):
    def step(h, x_t):
        h_new = jnp.tanh(x_t @ w_ih.T + b_ih + h @ w_hh.T + b_hh)
        return h_new, None

    h0 = jnp.zeros((x.shape[1], w_ih.shape[0]), jnp.float32)
    h_n, _ = jax.lax.scan(step, h0, x)
    logits = h_n @ w_lab.T + b_lab
    return logits[None, :, :]


if __name__ == "__main__":
    # Small shapes consistent with the module's forward.
    T, B = 8, 4                    # seq_len, batch
    input_size, hidden_size, output_size = 16, 32, 8

    key = jax.random.PRNGKey(0)
    k = jax.random.split(key, 7)
    bound = 1.0 / np.sqrt(hidden_size)

    x = jax.random.normal(k[0], (T, B, input_size), jnp.float32)
    w_ih = jax.random.uniform(k[1], (hidden_size, input_size), jnp.float32,
                              -bound, bound)
    w_hh = jax.random.uniform(k[2], (hidden_size, hidden_size), jnp.float32,
                              -bound, bound)
    b_ih = jax.random.uniform(k[3], (hidden_size,), jnp.float32, -bound, bound)
    b_hh = jax.random.uniform(k[4], (hidden_size,), jnp.float32, -bound, bound)
    w_lab = jax.random.uniform(k[5], (output_size, hidden_size), jnp.float32,
                               -bound, bound)
    b_lab = jax.random.uniform(k[6], (output_size,), jnp.float32, -bound, bound)

    # bf16 MXU inputs (f32 accumulate) on v6e/v7x; plain f32 on v5e and older.
    use_bf16 = _mxu_prefers_bf16()
    mxu_dtype = jnp.bfloat16 if use_bf16 else jnp.float32

    # One-time weight prep, hoisted out of the per-call forward path.
    params = prepare_rnn_params(w_ih, w_hh, b_ih, b_hh, w_lab, b_lab,
                                mxu_dtype=mxu_dtype)
    params = jax.tree_util.tree_map(jax.block_until_ready, params)

    out = rnn_label_forward(x, params, output_size=output_size)
    out = jax.block_until_ready(out)

    ref = rnn_label_reference(x, w_ih, w_hh, b_ih, b_hh, w_lab, b_lab)
    tol = 5e-2 if use_bf16 else 1e-5   # bf16 MXU inputs trade accuracy for latency
    np.testing.assert_allclose(np.asarray(out), np.asarray(ref),
                               rtol=tol, atol=tol)
    assert out.shape == (1, B, output_size)
    print("KERNEL_OK")
</pallas_src>

<mosaic_0001>
module attributes {stable_mosaic.version = 11 : i64} {
  func.func @rnn_label_kernel(%arg0: memref<64x128xf32, #tpu.memory_space<vmem>>, %arg1: memref<128x128xf32, #tpu.memory_space<vmem>>, %arg2: memref<128x128xf32, #tpu.memory_space<vmem>>, %arg3: memref<1x128xf32, #tpu.memory_space<vmem>>, %arg4: memref<128x128xf32, #tpu.memory_space<vmem>>, %arg5: memref<1x128xf32, #tpu.memory_space<vmem>>, %arg6: memref<8x128xf32, #tpu.memory_space<vmem>>) attributes {dimension_semantics = [], scalar_prefetch = 0 : i64, scratch_operands = 0 : i64, tpu.core_type = #tpu.core_type<tc>} {
    %c0 = arith.constant 0 : index
    %c0_0 = arith.constant 0 : index
    %0 = vector.load %arg0[%c0, %c0_0] : memref<64x128xf32, #tpu.memory_space<vmem>>, vector<64x128xf32>
    %c0_1 = arith.constant 0 : index
    %c0_2 = arith.constant 0 : index
    %1 = vector.load %arg1[%c0_1, %c0_2] : memref<128x128xf32, #tpu.memory_space<vmem>>, vector<128x128xf32>
    %cst = arith.constant dense<0.000000e+00> : vector<64x128xf32>
    %2 = tpu.matmul %0, %1, %cst {dimension_numbers = #tpu.dot_dimension_numbers<[1], [0], [0], [1], [0, 0, 1, 1], [], []>} : vector<64x128xf32>, vector<128x128xf32>, vector<64x128xf32> -> vector<64x128xf32>
    %c0_3 = arith.constant 0 : index
    %c0_4 = arith.constant 0 : index
    %3 = vector.load %arg3[%c0_3, %c0_4] : memref<1x128xf32, #tpu.memory_space<vmem>>, vector<1x128xf32>
    %4 = vector.broadcast %3 : vector<1x128xf32> to vector<64x128xf32>
    %5 = arith.addf %2, %4 : vector<64x128xf32>
    %6 = vector.extract_strided_slice %5 {offsets = [0, 0], sizes = [8, 128], strides = [1, 1]} : vector<64x128xf32> to vector<8x128xf32>
    %7 = math.tanh %6 : vector<8x128xf32>
    %8 = vector.extract_strided_slice %5 {offsets = [8, 0], sizes = [8, 128], strides = [1, 1]} : vector<64x128xf32> to vector<8x128xf32>
    %c0_5 = arith.constant 0 : index
    %c0_6 = arith.constant 0 : index
    %9 = vector.load %arg2[%c0_5, %c0_6] : memref<128x128xf32, #tpu.memory_space<vmem>>, vector<128x128xf32>
    %cst_7 = arith.constant dense<0.000000e+00> : vector<8x128xf32>
    %10 = tpu.matmul %7, %9, %cst_7 {dimension_numbers = #tpu.dot_dimension_numbers<[1], [0], [0], [1], [0, 0, 1, 1], [], []>} : vector<8x128xf32>, vector<128x128xf32>, vector<8x128xf32> -> vector<8x128xf32>
    %11 = arith.addf %8, %10 : vector<8x128xf32>
    %12 = math.tanh %11 : vector<8x128xf32>
    %13 = vector.extract_strided_slice %5 {offsets = [16, 0], sizes = [8, 128], strides = [1, 1]} : vector<64x128xf32> to vector<8x128xf32>
    %c0_8 = arith.constant 0 : index
    %c0_9 = arith.constant 0 : index
    %14 = vector.load %arg2[%c0_8, %c0_9] : memref<128x128xf32, #tpu.memory_space<vmem>>, vector<128x128xf32>
    %cst_10 = arith.constant dense<0.000000e+00> : vector<8x128xf32>
    %15 = tpu.matmul %12, %14, %cst_10 {dimension_numbers = #tpu.dot_dimension_numbers<[1], [0], [0], [1], [0, 0, 1, 1], [], []>} : vector<8x128xf32>, vector<128x128xf32>, vector<8x128xf32> -> vector<8x128xf32>
    %16 = arith.addf %13, %15 : vector<8x128xf32>
    %17 = math.tanh %16 : vector<8x128xf32>
    %18 = vector.extract_strided_slice %5 {offsets = [24, 0], sizes = [8, 128], strides = [1, 1]} : vector<64x128xf32> to vector<8x128xf32>
    %c0_11 = arith.constant 0 : index
    %c0_12 = arith.constant 0 : index
    %19 = vector.load %arg2[%c0_11, %c0_12] : memref<128x128xf32, #tpu.memory_space<vmem>>, vector<128x128xf32>
    %cst_13 = arith.constant dense<0.000000e+00> : vector<8x128xf32>
    %20 = tpu.matmul %17, %19, %cst_13 {dimension_numbers = #tpu.dot_dimension_numbers<[1], [0], [0], [1], [0, 0, 1, 1], [], []>} : vector<8x128xf32>, vector<128x128xf32>, vector<8x128xf32> -> vector<8x128xf32>
    %21 = arith.addf %18, %20 : vector<8x128xf32>
    %22 = math.tanh %21 : vector<8x128xf32>
    %23 = vector.extract_strided_slice %5 {offsets = [32, 0], sizes = [8, 128], strides = [1, 1]} : vector<64x128xf32> to vector<8x128xf32>
    %c0_14 = arith.constant 0 : index
    %c0_15 = arith.constant 0 : index
    %24 = vector.load %arg2[%c0_14, %c0_15] : memref<128x128xf32, #tpu.memory_space<vmem>>, vector<128x128xf32>
    %cst_16 = arith.constant dense<0.000000e+00> : vector<8x128xf32>
    %25 = tpu.matmul %22, %24, %cst_16 {dimension_numbers = #tpu.dot_dimension_numbers<[1], [0], [0], [1], [0, 0, 1, 1], [], []>} : vector<8x128xf32>, vector<128x128xf32>, vector<8x128xf32> -> vector<8x128xf32>
    %26 = arith.addf %23, %25 : vector<8x128xf32>
    %27 = math.tanh %26 : vector<8x128xf32>
    %28 = vector.extract_strided_slice %5 {offsets = [40, 0], sizes = [8, 128], strides = [1, 1]} : vector<64x128xf32> to vector<8x128xf32>
    %c0_17 = arith.constant 0 : index
    %c0_18 = arith.constant 0 : index
    %29 = vector.load %arg2[%c0_17, %c0_18] : memref<128x128xf32, #tpu.memory_space<vmem>>, vector<128x128xf32>
    %cst_19 = arith.constant dense<0.000000e+00> : vector<8x128xf32>
    %30 = tpu.matmul %27, %29, %cst_19 {dimension_numbers = #tpu.dot_dimension_numbers<[1], [0], [0], [1], [0, 0, 1, 1], [], []>} : vector<8x128xf32>, vector<128x128xf32>, vector<8x128xf32> -> vector<8x128xf32>
    %31 = arith.addf %28, %30 : vector<8x128xf32>
    %32 = math.tanh %31 : vector<8x128xf32>
    %33 = vector.extract_strided_slice %5 {offsets = [48, 0], sizes = [8, 128], strides = [1, 1]} : vector<64x128xf32> to vector<8x128xf32>
    %c0_20 = arith.constant 0 : index
    %c0_21 = arith.constant 0 : index
    %34 = vector.load %arg2[%c0_20, %c0_21] : memref<128x128xf32, #tpu.memory_space<vmem>>, vector<128x128xf32>
    %cst_22 = arith.constant dense<0.000000e+00> : vector<8x128xf32>
    %35 = tpu.matmul %32, %34, %cst_22 {dimension_numbers = #tpu.dot_dimension_numbers<[1], [0], [0], [1], [0, 0, 1, 1], [], []>} : vector<8x128xf32>, vector<128x128xf32>, vector<8x128xf32> -> vector<8x128xf32>
    %36 = arith.addf %33, %35 : vector<8x128xf32>
    %37 = math.tanh %36 : vector<8x128xf32>
    %38 = vector.extract_strided_slice %5 {offsets = [56, 0], sizes = [8, 128], strides = [1, 1]} : vector<64x128xf32> to vector<8x128xf32>
    %c0_23 = arith.constant 0 : index
    %c0_24 = arith.constant 0 : index
    %39 = vector.load %arg2[%c0_23, %c0_24] : memref<128x128xf32, #tpu.memory_space<vmem>>, vector<128x128xf32>
    %cst_25 = arith.constant dense<0.000000e+00> : vector<8x128xf32>
    %40 = tpu.matmul %37, %39, %cst_25 {dimension_numbers = #tpu.dot_dimension_numbers<[1], [0], [0], [1], [0, 0, 1, 1], [], []>} : vector<8x128xf32>, vector<128x128xf32>, vector<8x128xf32> -> vector<8x128xf32>
    %41 = arith.addf %38, %40 : vector<8x128xf32>
    %42 = math.tanh %41 : vector<8x128xf32>
    %c0_26 = arith.constant 0 : index
    %c0_27 = arith.constant 0 : index
    %43 = vector.load %arg4[%c0_26, %c0_27] : memref<128x128xf32, #tpu.memory_space<vmem>>, vector<128x128xf32>
    %cst_28 = arith.constant dense<0.000000e+00> : vector<8x128xf32>
    %44 = tpu.matmul %42, %43, %cst_28 {dimension_numbers = #tpu.dot_dimension_numbers<[1], [0], [0], [1], [0, 0, 1, 1], [], []>} : vector<8x128xf32>, vector<128x128xf32>, vector<8x128xf32> -> vector<8x128xf32>
    %c0_29 = arith.constant 0 : index
    %c0_30 = arith.constant 0 : index
    %45 = vector.load %arg5[%c0_29, %c0_30] : memref<1x128xf32, #tpu.memory_space<vmem>>, vector<1x128xf32>
    %46 = vector.broadcast %45 : vector<1x128xf32> to vector<8x128xf32>
    %47 = arith.addf %44, %46 : vector<8x128xf32>
    %c0_31 = arith.constant 0 : index
    %c0_32 = arith.constant 0 : index
    %48 = vector.load %arg6[%c0_31, %c0_32] : memref<8x128xf32, #tpu.memory_space<vmem>>, vector<8x128xf32>
    tpu.vector_store %arg6[%c0_31, %c0_32], %47 {strides = array<i32>} : memref<8x128xf32, #tpu.memory_space<vmem>>, vector<8x128xf32>,
    return
  }
}

</mosaic_0001>

<llo_original>
// kernel: rnn_label_forward.1
$region0: #{rnn_label_forward.1}
  #allocation0 [shape = 'u32[]', space=smem, size = 0x4, offset = 0x4, fixed_abs, tag = 'smem constant byte address 0x4 - core index']
  #allocation1 [shape = 'u32[144,128]{1,0:T(1,128)}', space=vmem, size = 0x12000, scoped, tag = 'internal scratch']
  %s0 = inlined_call_operand.vmem [shape: f32[64,128], index: 0, kind: input, shape index: {}]
  %s1 = inlined_call_operand.hbm [shape: f32[128,128], index: 1, kind: input, shape index: {}]
  %s2 = inlined_call_operand.hbm [shape: f32[128,128], index: 2, kind: input, shape index: {}]
  %s3 = inlined_call_operand.vmem [shape: f32[1,128], index: 3, kind: input, shape index: {}]
  %s4 = inlined_call_operand.hbm [shape: f32[128,128], index: 4, kind: input, shape index: {}]
  %s5 = inlined_call_operand.vmem [shape: f32[1,128], index: 5, kind: input, shape index: {}]
  %s6 = inlined_call_operand.vmem [shape: f32[8,128], index: 6, kind: output, shape index: {}]
  %s7 = sld [smem:[#allocation0]]
  $region46: #{rnn_label_forward.1} parent=0
    _
  %s9 = ssub.s32 1, %s7
  %s10 = scalar_select 0, %s9, %s7
  $region1: #{rnn_label_forward.1} parent=0
    #allocation2 [shape = 'u8[65536]{0}', space=vmem, size = 0x10000, scoped, tag = 'input window, operand 1, single buffered']
    #allocation3 [shape = 's32[1]{0}', space=sflag, size = 0x4, scoped, tag = 'scoped memory for rnn_label_forward.1']
    #allocation4 [shape = 'u8[65536]{0}', space=vmem, size = 0x10000, scoped, tag = 'input window, operand 2, single buffered']
    #allocation5 [shape = 's32[1]{0}', space=sflag, size = 0x4, scoped, tag = 'scoped memory for rnn_label_forward.1']
    #allocation6 [shape = 'u8[65536]{0}', space=vmem, size = 0x10000, scoped, tag = 'input window, operand 4, single buffered']
    %11 = vsyncpa [#allocation3], 0
    %12 = vsyncpa [#allocation5], 0
    // Predicated region
    $region2: #{rnn_label_forward.1} parent=1 // pred_check
      _
    $region3: #{rnn_label_forward.1} parent=1 // pred_check_branch
      %14 = sbr.rel (0) target = $region5
    $region4: #{rnn_label_forward.1} parent=1 // pred_region
      _
    $region5: #{rnn_label_forward.1} parent=1 // pred_fallthru
      _
    // Predicated region
    $region6: #{rnn_label_forward.1} parent=1 // pred_check
      _
    $region7: #{rnn_label_forward.1} parent=1 // pred_check_branch
      %16 = sbr.rel (0) target = $region9
    $region8: #{rnn_label_forward.1} parent=1 // pred_region
      %s18 = ssub.s32 2048, 2048
      %19 = vsyncadd [#allocation3], %s18
      %s20 = sshll.u32 [#allocation2], 4
      %s21 = int_to_ptr.vmem [resolvable:$true] %s20
      %26 = dma.hbm_to_vmem [thread:$0]  %s1, 2048, %s21, [#allocation3], 128, 128, 8
    $region9: #{rnn_label_forward.1} parent=1 // pred_fallthru
      _
    // Predicated region
    $region10: #{rnn_label_forward.1} parent=1 // pred_check
      _
    $region11: #{rnn_label_forward.1} parent=1 // pred_check_branch
      %28 = sbr.rel (0) target = $region13
    $region12: #{rnn_label_forward.1} parent=1 // pred_region
      %s30 = ssub.s32 2048, 2048
      %31 = vsyncadd [#allocation5], %s30
      %s32 = sshll.u32 [#allocation4], 4
      %s33 = int_to_ptr.vmem [resolvable:$true] %s32
      %38 = dma.hbm_to_vmem [thread:$0]  %s2, 2048, %s33, [#allocation5], 128, 128, 8
    $region13: #{rnn_label_forward.1} parent=1 // pred_fallthru
      _
    // Predicated region
    $region14: #{rnn_label_forward.1} parent=1 // pred_check
      _
    $region15: #{rnn_label_forward.1} parent=1 // pred_check_branch
      %40 = sbr.rel (0) target = $region17
    $region16: #{rnn_label_forward.1} parent=1 // pred_region
      _
    $region17: #{rnn_label_forward.1} parent=1 // pred_fallthru
      _
    // Predicated region
    $region18: #{rnn_label_forward.1} parent=1 // pred_check
      _
    $region19: #{rnn_label_forward.1} parent=1 // pred_check_branch
      %42 = sbr.rel (0) target = $region21
    $region20: #{rnn_label_forward.1} parent=1 // pred_region
      %s44 = ssub.s32 2048, 2048
      %45 = vsyncadd [#allocation5], %s44
      %s46 = sshll.u32 [#allocation6], 4
      %s47 = int_to_ptr.vmem [resolvable:$true] %s46
      %52 = dma.hbm_to_vmem [thread:$0]  %s4, 2048, %s47, [#allocation5], 128, 128, 8
    $region21: #{rnn_label_forward.1} parent=1 // pred_fallthru
      _
    // Predicated region
    $region22: #{rnn_label_forward.1} parent=1 // pred_check
      _
    $region23: #{rnn_label_forward.1} parent=1 // pred_check_branch
      %54 = sbr.rel (0) target = $region25
    $region24: #{rnn_label_forward.1} parent=1 // pred_region
      _
    $region25: #{rnn_label_forward.1} parent=1 // pred_fallthru
      _
    // Predicated region
    $region26: #{rnn_label_forward.1} parent=1 // pred_check
      _
    $region27: #{rnn_label_forward.1} parent=1 // pred_check_branch
      %56 = sbr.rel (0) target = $region29
    $region28: #{rnn_label_forward.1} parent=1 // pred_region
      %57 = dma.done [#allocation3], 2048
    $region29: #{rnn_label_forward.1} parent=1 // pred_fallthru
      _
    // Predicated region
    $region30: #{rnn_label_forward.1} parent=1 // pred_check
      _
    $region31: #{rnn_label_forward.1} parent=1 // pred_check_branch
      %59 = sbr.rel (0) target = $region33
    $region32: #{rnn_label_forward.1} parent=1 // pred_region
      %60 = dma.done [#allocation5], 2048
    $region33: #{rnn_label_forward.1} parent=1 // pred_fallthru
      _
    // Predicated region
    $region34: #{rnn_label_forward.1} parent=1 // pred_check
      _
    $region35: #{rnn_label_forward.1} parent=1 // pred_check_branch
      %62 = sbr.rel (0) target = $region37
    $region36: #{rnn_label_forward.1} parent=1 // pred_region
      %63 = dma.done [#allocation5], 2048
    $region37: #{rnn_label_forward.1} parent=1 // pred_fallthru
      _
    %v64 = vld [vmem:[%s0] sm:$0xff]
    %v65 = vld [vmem:[%s0 + $0x8] sm:$0xff]
    %v66 = vld [vmem:[%s0 + $0x10] sm:$0xff]
    %v67 = vld [vmem:[%s0 + $0x18] sm:$0xff]
    %v68 = vld [vmem:[%s0 + $0x20] sm:$0xff]
    %v69 = vld [vmem:[%s0 + $0x28] sm:$0xff]
    %v70 = vld [vmem:[%s0 + $0x30] sm:$0xff]
    %v71 = vld [vmem:[%s0 + $0x38] sm:$0xff]
    %v72 = vld [vmem:[#allocation2] sm:$0xff]
    %v73 = vld [vmem:[#allocation2 + $0x8] sm:$0xff]
    %v74 = vld [vmem:[#allocation2 + $0x10] sm:$0xff]
    %v75 = vld [vmem:[#allocation2 + $0x18] sm:$0xff]
    %v76 = vld [vmem:[#allocation2 + $0x20] sm:$0xff]
    %v77 = vld [vmem:[#allocation2 + $0x28] sm:$0xff]
    %v78 = vld [vmem:[#allocation2 + $0x30] sm:$0xff]
    %v79 = vld [vmem:[#allocation2 + $0x38] sm:$0xff]
    %v80 = vld [vmem:[#allocation2 + $0x40] sm:$0xff]
    %v81 = vld [vmem:[#allocation2 + $0x48] sm:$0xff]
    %v82 = vld [vmem:[#allocation2 + $0x50] sm:$0xff]
    %v83 = vld [vmem:[#allocation2 + $0x58] sm:$0xff]
    %v84 = vld [vmem:[#allocation2 + $0x60] sm:$0xff]
    %v85 = vld [vmem:[#allocation2 + $0x68] sm:$0xff]
    %v86 = vld [vmem:[#allocation2 + $0x70] sm:$0xff]
    %v87 = vld [vmem:[#allocation2 + $0x78] sm:$0xff]
    %v88 = vld [vmem:[%s3] sm:$0x1]
    %v90 = vlaneseq
    %v91 = vshrl.u32 %v90, 7
    %v92 = vsub.s32 0, %v91
    %v93 = vrot.slane %v88, %v92
    %95 = vmatprep.subr.mxu0 0.0
    %96 = vmatpush1.msra.mxu0 %v72
    %97 = vmatprep.subr.mxu0 0.0
    %98 = vmatpush1.msra.mxu0 %v73
    %99 = vmatprep.subr.mxu0 0.0
    %100 = vmatpush1.msra.mxu0 %v74
    %101 = vmatprep.subr.mxu0 0.0
    %102 = vmatpush1.msra.mxu0 %v75
    %103 = vmatprep.subr.mxu0 0.0
    %104 = vmatpush1.msra.mxu0 %v76
    %105 = vmatprep.subr.mxu0 0.0
    %106 = vmatpush1.msra.mxu0 %v77
    %107 = vmatprep.subr.mxu0 0.0
    %108 = vmatpush1.msra.mxu0 %v78
    %109 = vmatprep.subr.mxu0 0.0
    %110 = vmatpush1.msra.mxu0 %v79
    %111 = vmatprep.subr.mxu0 0.0
    %112 = vmatpush1.msra.mxu0 %v80
    %113 = vmatprep.subr.mxu0 0.0
    %114 = vmatpush1.msra.mxu0 %v81
    %115 = vmatprep.subr.mxu0 0.0
    %116 = vmatpush1.msra.mxu0 %v82
    %117 = vmatprep.subr.mxu0 0.0
    %118 = vmatpush1.msra.mxu0 %v83
    %119 = vmatprep.subr.mxu0 0.0
    %120 = vmatpush1.msra.mxu0 %v84
    %121 = vmatprep.subr.mxu0 0.0
    %122 = vmatpush1.msra.mxu0 %v85
    %123 = vmatprep.subr.mxu0 0.0
    %124 = vmatpush1.msra.mxu0 %v86
    %125 = vmatprep.subr.mxu0 0.0
    %126 = vmatpush1.msra.mxu0 %v87
    %127 = vmatprep.subr.mxu0 0.0
    %128 = vmatpush1.msra.mxu0 0.0
    %129 = vmatprep.subr.mxu0 0.0
    %130 = vmatpush1.msra.mxu0 0.0
    %131 = vmatprep.subr.mxu0 0.0
    %132 = vmatpush1.msra.mxu0 0.0
    %133 = vmatprep.subr.mxu0 0.0
    %134 = vmatpush1.msra.mxu0 0.0
    %135 = vmatprep.subr.mxu0 0.0
    %136 = vmatpush1.msra.mxu0 0.0
    %137 = vmatprep.subr.mxu0 0.0
    %138 = vmatpush1.msra.mxu0 0.0
    %139 = vmatprep.subr.mxu0 0.0
    %140 = vmatpush1.msra.mxu0 0.0
    %141 = vmatprep.subr.mxu0 0.0
    %142 = vmatpush1.msra.mxu0 0.0
    %143 = vmatprep.subr.mxu0 0.0
    %144 = vmatpush1.msra.mxu0 0.0
    %145 = vmatprep.subr.mxu0 0.0
    %146 = vmatpush1.msra.mxu0 0.0
    %147 = vmatprep.subr.mxu0 0.0
    %148 = vmatpush1.msra.mxu0 0.0
    %149 = vmatprep.subr.mxu0 0.0
    %150 = vmatpush1.msra.mxu0 0.0
    %151 = vmatprep.subr.mxu0 0.0
    %152 = vmatpush1.msra.mxu0 0.0
    %153 = vmatprep.subr.mxu0 0.0
    %154 = vmatpush1.msra.mxu0 0.0
    %155 = vmatprep.subr.mxu0 0.0
    %156 = vmatpush1.msra.mxu0 0.0
    %157 = vmatprep.subr.mxu0 0.0
    %158 = vmatpush1.msra.mxu0 0.0
    %159 = vmatprep.mubr.f32.mxu0 0.0
    %160 = vmatmul.mubr.f32.gmra.mrb[0].mxu0 %v64
    %v161 = vpop.f32.mrb[0].mxu0
    %v162 = vadd.f32 %v93, %v161
    %v163 = vpop.f32.mrb[0].mxu0
    %164 = vmatprep.mubr.f32.mxu0 0.0
    %165 = vmatmul.mubr.f32.gmra.mrb[0].mxu0 %v65
    %v166 = vpop.f32.mrb[0].mxu0
    %v167 = vadd.f32 %v93, %v166
    %v168 = vpop.f32.mrb[0].mxu0
    %169 = vmatprep.mubr.f32.mxu0 0.0
    %170 = vmatmul.mubr.f32.gmra.mrb[0].mxu0 %v66
    %v171 = vpop.f32.mrb[0].mxu0
    %v172 = vadd.f32 %v93, %v171
    %v173 = vpop.f32.mrb[0].mxu0
    %174 = vmatprep.mubr.f32.mxu0 0.0
    %175 = vmatmul.mubr.f32.gmra.mrb[0].mxu0 %v67
    %v176 = vpop.f32.mrb[0].mxu0
    %v177 = vadd.f32 %v93, %v176
    %v178 = vpop.f32.mrb[0].mxu0
    %179 = vmatprep.mubr.f32.mxu0 0.0
    %180 = vmatmul.mubr.f32.gmra.mrb[0].mxu0 %v68
    %v181 = vpop.f32.mrb[0].mxu0
    %v182 = vadd.f32 %v93, %v181
    %v183 = vpop.f32.mrb[0].mxu0
    %184 = vmatprep.mubr.f32.mxu0 0.0
    %185 = vmatmul.mubr.f32.gmra.mrb[0].mxu0 %v69
    %v186 = vpop.f32.mrb[0].mxu0
    %v187 = vadd.f32 %v93, %v186
    %v188 = vpop.f32.mrb[0].mxu0
    %189 = vmatprep.mubr.f32.mxu0 0.0
    %190 = vmatmul.mubr.f32.gmra.mrb[0].mxu0 %v70
    %v191 = vpop.f32.mrb[0].mxu0
    %v192 = vadd.f32 %v93, %v191
    %v193 = vpop.f32.mrb[0].mxu0
    %194 = vmatprep.mubr.f32.mxu0 0.0
    %195 = vmatmul.mubr.f32.gmra.mrb[0].mxu0 %v71
    %v196 = vpop.f32.mrb[0].mxu0
    %v197 = vadd.f32 %v93, %v196
    %v198 = vpop.f32.mrb[0].mxu0
    %199 = vdwg.mxu0
    %v200 = vtanh.pop %v162
    %v201 = vld [vmem:[#allocation4] sm:$0xff]
    %v202 = vld [vmem:[#allocation4 + $0x8] sm:$0xff]
    %v203 = vld [vmem:[#allocation4 + $0x10] sm:$0xff]
    %v204 = vld [vmem:[#allocation4 + $0x18] sm:$0xff]
    %v205 = vld [vmem:[#allocation4 + $0x20] sm:$0xff]
    %v206 = vld [vmem:[#allocation4 + $0x28] sm:$0xff]
    %v207 = vld [vmem:[#allocation4 + $0x30] sm:$0xff]
    %v208 = vld [vmem:[#allocation4 + $0x38] sm:$0xff]
    %v209 = vld [vmem:[#allocation4 + $0x40] sm:$0xff]
    %v210 = vld [vmem:[#allocation4 + $0x48] sm:$0xff]
    %v211 = vld [vmem:[#allocation4 + $0x50] sm:$0xff]
    %v212 = vld [vmem:[#allocation4 + $0x58] sm:$0xff]
    %v213 = vld [vmem:[#allocation4 + $0x60] sm:$0xff]
    %v214 = vld [vmem:[#allocation4 + $0x68] sm:$0xff]
    %v215 = vld [vmem:[#allocation4 + $0x70] sm:$0xff]
    %v216 = vld [vmem:[#allocation4 + $0x78] sm:$0xff]
    %217 = vmatprep.subr.mxu0 0.0
    %218 = vmatpush1.msra.mxu0 %v201
    %219 = vmatprep.subr.mxu0 0.0
    %220 = vmatpush1.msra.mxu0 %v202
    %221 = vmatprep.subr.mxu0 0.0
    %222 = vmatpush1.msra.mxu0 %v203
    %223 = vmatprep.subr.mxu0 0.0
    %224 = vmatpush1.msra.mxu0 %v204
    %225 = vmatprep.subr.mxu0 0.0
    %226 = vmatpush1.msra.mxu0 %v205
    %227 = vmatprep.subr.mxu0 0.0
    %228 = vmatpush1.msra.mxu0 %v206
    %229 = vmatprep.subr.mxu0 0.0
    %230 = vmatpush1.msra.mxu0 %v207
    %231 = vmatprep.subr.mxu0 0.0
    %232 = vmatpush1.msra.mxu0 %v208
    %233 = vmatprep.subr.mxu0 0.0
    %234 = vmatpush1.msra.mxu0 %v209
    %235 = vmatprep.subr.mxu0 0.0
    %236 = vmatpush1.msra.mxu0 %v210
    %237 = vmatprep.subr.mxu0 0.0
    %238 = vmatpush1.msra.mxu0 %v211
    %239 = vmatprep.subr.mxu0 0.0
    %240 = vmatpush1.msra.mxu0 %v212
    %241 = vmatprep.subr.mxu0 0.0
    %242 = vmatpush1.msra.mxu0 %v213
    %243 = vmatprep.subr.mxu0 0.0
    %244 = vmatpush1.msra.mxu0 %v214
    %245 = vmatprep.subr.mxu0 0.0
    %246 = vmatpush1.msra.mxu0 %v215
    %247 = vmatprep.subr.mxu0 0.0
    %248 = vmatpush1.msra.mxu0 %v216
    %249 = vmatprep.subr.mxu0 0.0
    %250 = vmatpush1.msra.mxu0 0.0
    %251 = vmatprep.subr.mxu0 0.0
    %252 = vmatpush1.msra.mxu0 0.0
    %253 = vmatprep.subr.mxu0 0.0
    %254 = vmatpush1.msra.mxu0 0.0
    %255 = vmatprep.subr.mxu0 0.0
    %256 = vmatpush1.msra.mxu0 0.0
    %257 = vmatprep.subr.mxu0 0.0
    %258 = vmatpush1.msra.mxu0 0.0
    %259 = vmatprep.subr.mxu0 0.0
    %260 = vmatpush1.msra.mxu0 0.0
    %261 = vmatprep.subr.mxu0 0.0
    %262 = vmatpush1.msra.mxu0 0.0
    %263 = vmatprep.subr.mxu0 0.0
    %264 = vmatpush1.msra.mxu0 0.0
    %265 = vmatprep.subr.mxu0 0.0
    %266 = vmatpush1.msra.mxu0 0.0
    %267 = vmatprep.subr.mxu0 0.0
    %268 = vmatpush1.msra.mxu0 0.0
    %269 = vmatprep.subr.mxu0 0.0
    %270 = vmatpush1.msra.mxu0 0.0
    %271 = vmatprep.subr.mxu0 0.0
    %272 = vmatpush1.msra.mxu0 0.0
    %273 = vmatprep.subr.mxu0 0.0
    %274 = vmatpush1.msra.mxu0 0.0
    %275 = vmatprep.subr.mxu0 0.0
    %276 = vmatpush1.msra.mxu0 0.0
    %277 = vmatprep.subr.mxu0 0.0
    %278 = vmatpush1.msra.mxu0 0.0
    %279 = vmatprep.subr.mxu0 0.0
    %280 = vmatpush1.msra.mxu0 0.0
    %281 = vmatprep.mubr.f32.mxu0 0.0
    %282 = vmatmul.mubr.f32.gmra.mrb[0].mxu0 %v200
    %v283 = vpop.f32.mrb[0].mxu0
    %v284 = vadd.f32 0.0, %v283
    %v285 = vpop.f32.mrb[0].mxu0
    %286 = vdwg.mxu0
    %v287 = vadd.f32 %v167, %v284
    %v288 = vtanh.pop %v287
    %289 = vmatprep.subr.mxu0 0.0
    %290 = vmatpush1.msra.mxu0 %v201
    %291 = vmatprep.subr.mxu0 0.0
    %292 = vmatpush1.msra.mxu0 %v202
    %293 = vmatprep.subr.mxu0 0.0
    %294 = vmatpush1.msra.mxu0 %v203
    %295 = vmatprep.subr.mxu0 0.0
    %296 = vmatpush1.msra.mxu0 %v204
    %297 = vmatprep.subr.mxu0 0.0
    %298 = vmatpush1.msra.mxu0 %v205
    %299 = vmatprep.subr.mxu0 0.0
    %300 = vmatpush1.msra.mxu0 %v206
    %301 = vmatprep.subr.mxu0 0.0
    %302 = vmatpush1.msra.mxu0 %v207
    %303 = vmatprep.subr.mxu0 0.0
    %304 = vmatpush1.msra.mxu0 %v208
    %305 = vmatprep.subr.mxu0 0.0
    %306 = vmatpush1.msra.mxu0 %v209
    %307 = vmatprep.subr.mxu0 0.0
    %308 = vmatpush1.msra.mxu0 %v210
    %309 = vmatprep.subr.mxu0 0.0
    %310 = vmatpush1.msra.mxu0 %v211
    %311 = vmatprep.subr.mxu0 0.0
    %312 = vmatpush1.msra.mxu0 %v212
    %313 = vmatprep.subr.mxu0 0.0
    %314 = vmatpush1.msra.mxu0 %v213
    %315 = vmatprep.subr.mxu0 0.0
    %316 = vmatpush1.msra.mxu0 %v214
    %317 = vmatprep.subr.mxu0 0.0
    %318 = vmatpush1.msra.mxu0 %v215
    %319 = vmatprep.subr.mxu0 0.0
    %320 = vmatpush1.msra.mxu0 %v216
    %321 = vmatprep.subr.mxu0 0.0
    %322 = vmatpush1.msra.mxu0 0.0
    %323 = vmatprep.subr.mxu0 0.0
    %324 = vmatpush1.msra.mxu0 0.0
    %325 = vmatprep.subr.mxu0 0.0
    %326 = vmatpush1.msra.mxu0 0.0
    %327 = vmatprep.subr.mxu0 0.0
    %328 = vmatpush1.msra.mxu0 0.0
    %329 = vmatprep.subr.mxu0 0.0
    %330 = vmatpush1.msra.mxu0 0.0
    %331 = vmatprep.subr.mxu0 0.0
    %332 = vmatpush1.msra.mxu0 0.0
    %333 = vmatprep.subr.mxu0 0.0
    %334 = vmatpush1.msra.mxu0 0.0
    %335 = vmatprep.subr.mxu0 0.0
    %336 = vmatpush1.msra.mxu0 0.0
    %337 = vmatprep.subr.mxu0 0.0
    %338 = vmatpush1.msra.mxu0 0.0
    %339 = vmatprep.subr.mxu0 0.0
    %340 = vmatpush1.msra.mxu0 0.0
    %341 = vmatprep.subr.mxu0 0.0
    %342 = vmatpush1.msra.mxu0 0.0
    %343 = vmatprep.subr.mxu0 0.0
    %344 = vmatpush1.msra.mxu0 0.0
    %345 = vmatprep.subr.mxu0 0.0
    %346 = vmatpush1.msra.mxu0 0.0
    %347 = vmatprep.subr.mxu0 0.0
    %348 = vmatpush1.msra.mxu0 0.0
    %349 = vmatprep.subr.mxu0 0.0
    %350 = vmatpush1.msra.mxu0 0.0
    %351 = vmatprep.subr.mxu0 0.0
    %352 = vmatpush1.msra.mxu0 0.0
    %353 = vmatprep.mubr.f32.mxu0 0.0
    %354 = vmatmul.mubr.f32.gmra.mrb[0].mxu0 %v288
    %v355 = vpop.f32.mrb[0].mxu0
    %v356 = vadd.f32 0.0, %v355
    %v357 = vpop.f32.mrb[0].mxu0
    %358 = vdwg.mxu0
    %v359 = vadd.f32 %v172, %v356
    %v360 = vtanh.pop %v359
    %361 = vmatprep.subr.mxu0 0.0
    %362 = vmatpush1.msra.mxu0 %v201
    %363 = vmatprep.subr.mxu0 0.0
    %364 = vmatpush1.msra.mxu0 %v202
    %365 = vmatprep.subr.mxu0 0.0
    %366 = vmatpush1.msra.mxu0 %v203
    %367 = vmatprep.subr.mxu0 0.0
    %368 = vmatpush1.msra.mxu0 %v204
    %369 = vmatprep.subr.mxu0 0.0
    %370 = vmatpush1.msra.mxu0 %v205
    %371 = vmatprep.subr.mxu0 0.0
    %372 = vmatpush1.msra.mxu0 %v206
    %373 = vmatprep.subr.mxu0 0.0
    %374 = vmatpush1.msra.mxu0 %v207
    %375 = vmatprep.subr.mxu0 0.0
    %376 = vmatpush1.msra.mxu0 %v208
    %377 = vmatprep.subr.mxu0 0.0
    %378 = vmatpush1.msra.mxu0 %v209
    %379 = vmatprep.subr.mxu0 0.0
    %380 = vmatpush1.msra.mxu0 %v210
    %381 = vmatprep.subr.mxu0 0.0
    %382 = vmatpush1.msra.mxu0 %v211
    %383 = vmatprep.subr.mxu0 0.0
    %384 = vmatpush1.msra.mxu0 %v212
    %385 = vmatprep.subr.mxu0 0.0
    %386 = vmatpush1.msra.mxu0 %v213
    %387 = vmatprep.subr.mxu0 0.0
    %388 = vmatpush1.msra.mxu0 %v214
    %389 = vmatprep.subr.mxu0 0.0
    %390 = vmatpush1.msra.mxu0 %v215
    %391 = vmatprep.subr.mxu0 0.0
    %392 = vmatpush1.msra.mxu0 %v216
    %393 = vmatprep.subr.mxu0 0.0
    %394 = vmatpush1.msra.mxu0 0.0
    %395 = vmatprep.subr.mxu0 0.0
    %396 = vmatpush1.msra.mxu0 0.0
    %397 = vmatprep.subr.mxu0 0.0
    %398 = vmatpush1.msra.mxu0 0.0
    %399 = vmatprep.subr.mxu0 0.0
    %400 = vmatpush1.msra.mxu0 0.0
    %401 = vmatprep.subr.mxu0 0.0
    %402 = vmatpush1.msra.mxu0 0.0
    %403 = vmatprep.subr.mxu0 0.0
    %404 = vmatpush1.msra.mxu0 0.0
    %405 = vmatprep.subr.mxu0 0.0
    %406 = vmatpush1.msra.mxu0 0.0
    %407 = vmatprep.subr.mxu0 0.0
    %408 = vmatpush1.msra.mxu0 0.0
    %409 = vmatprep.subr.mxu0 0.0
    %410 = vmatpush1.msra.mxu0 0.0
    %411 = vmatprep.subr.mxu0 0.0
    %412 = vmatpush1.msra.mxu0 0.0
    %413 = vmatprep.subr.mxu0 0.0
    %414 = vmatpush1.msra.mxu0 0.0
    %415 = vmatprep.subr.mxu0 0.0
    %416 = vmatpush1.msra.mxu0 0.0
    %417 = vmatprep.subr.mxu0 0.0
    %418 = vmatpush1.msra.mxu0 0.0
    %419 = vmatprep.subr.mxu0 0.0
    %420 = vmatpush1.msra.mxu0 0.0
    %421 = vmatprep.subr.mxu0 0.0
    %422 = vmatpush1.msra.mxu0 0.0
    %423 = vmatprep.subr.mxu0 0.0
    %424 = vmatpush1.msra.mxu0 0.0
    %425 = vmatprep.mubr.f32.mxu0 0.0
    %426 = vmatmul.mubr.f32.gmra.mrb[0].mxu0 %v360
    %v427 = vpop.f32.mrb[0].mxu0
    %v428 = vadd.f32 0.0, %v427
    %v429 = vpop.f32.mrb[0].mxu0
    %430 = vdwg.mxu0
    %v431 = vadd.f32 %v177, %v428
    %v432 = vtanh.pop %v431
    %433 = vmatprep.subr.mxu0 0.0
    %434 = vmatpush1.msra.mxu0 %v201
    %435 = vmatprep.subr.mxu0 0.0
    %436 = vmatpush1.msra.mxu0 %v202
    %437 = vmatprep.subr.mxu0 0.0
    %438 = vmatpush1.msra.mxu0 %v203
    %439 = vmatprep.subr.mxu0 0.0
    %440 = vmatpush1.msra.mxu0 %v204
    %441 = vmatprep.subr.mxu0 0.0
    %442 = vmatpush1.msra.mxu0 %v205
    %443 = vmatprep.subr.mxu0 0.0
    %444 = vmatpush1.msra.mxu0 %v206
    %445 = vmatprep.subr.mxu0 0.0
    %446 = vmatpush1.msra.mxu0 %v207
    %447 = vmatprep.subr.mxu0 0.0
    %448 = vmatpush1.msra.mxu0 %v208
    %449 = vmatprep.subr.mxu0 0.0
    %450 = vmatpush1.msra.mxu0 %v209
    %451 = vmatprep.subr.mxu0 0.0
    %452 = vmatpush1.msra.mxu0 %v210
    %453 = vmatprep.subr.mxu0 0.0
    %454 = vmatpush1.msra.mxu0 %v211
    %455 = vmatprep.subr.mxu0 0.0
    %456 = vmatpush1.msra.mxu0 %v212
    %457 = vmatprep.subr.mxu0 0.0
    %458 = vmatpush1.msra.mxu0 %v213
    %459 = vmatprep.subr.mxu0 0.0
    %460 = vmatpush1.msra.mxu0 %v214
    %461 = vmatprep.subr.mxu0 0.0
    %462 = vmatpush1.msra.mxu0 %v215
    %463 = vmatprep.subr.mxu0 0.0
    %464 = vmatpush1.msra.mxu0 %v216
    %465 = vmatprep.subr.mxu0 0.0
    %466 = vmatpush1.msra.mxu0 0.0
    %467 = vmatprep.subr.mxu0 0.0
    %468 = vmatpush1.msra.mxu0 0.0
    %469 = vmatprep.subr.mxu0 0.0
    %470 = vmatpush1.msra.mxu0 0.0
    %471 = vmatprep.subr.mxu0 0.0
    %472 = vmatpush1.msra.mxu0 0.0
    %473 = vmatprep.subr.mxu0 0.0
    %474 = vmatpush1.msra.mxu0 0.0
    %475 = vmatprep.subr.mxu0 0.0
    %476 = vmatpush1.msra.mxu0 0.0
    %477 = vmatprep.subr.mxu0 0.0
    %478 = vmatpush1.msra.mxu0 0.0
    %479 = vmatprep.subr.mxu0 0.0
    %480 = vmatpush1.msra.mxu0 0.0
    %481 = vmatprep.subr.mxu0 0.0
    %482 = vmatpush1.msra.mxu0 0.0
    %483 = vmatprep.subr.mxu0 0.0
    %484 = vmatpush1.msra.mxu0 0.0
    %485 = vmatprep.subr.mxu0 0.0
    %486 = vmatpush1.msra.mxu0 0.0
    %487 = vmatprep.subr.mxu0 0.0
    %488 = vmatpush1.msra.mxu0 0.0
    %489 = vmatprep.subr.mxu0 0.0
    %490 = vmatpush1.msra.mxu0 0.0
    %491 = vmatprep.subr.mxu0 0.0
    %492 = vmatpush1.msra.mxu0 0.0
    %493 = vmatprep.subr.mxu0 0.0
    %494 = vmatpush1.msra.mxu0 0.0
    %495 = vmatprep.subr.mxu0 0.0
    %496 = vmatpush1.msra.mxu0 0.0
    %497 = vmatprep.mubr.f32.mxu0 0.0
    %498 = vmatmul.mubr.f32.gmra.mrb[0].mxu0 %v432
    %v499 = vpop.f32.mrb[0].mxu0
    %v500 = vadd.f32 0.0, %v499
    %v501 = vpop.f32.mrb[0].mxu0
    %502 = vdwg.mxu0
    %v503 = vadd.f32 %v182, %v500
    %v504 = vtanh.pop %v503
    %505 = vmatprep.subr.mxu0 0.0
    %506 = vmatpush1.msra.mxu0 %v201
    %507 = vmatprep.subr.mxu0 0.0
    %508 = vmatpush1.msra.mxu0 %v202
    %509 = vmatprep.subr.mxu0 0.0
    %510 = vmatpush1.msra.mxu0 %v203
    %511 = vmatprep.subr.mxu0 0.0
    %512 = vmatpush1.msra.mxu0 %v204
    %513 = vmatprep.subr.mxu0 0.0
    %514 = vmatpush1.msra.mxu0 %v205
    %515 = vmatprep.subr.mxu0 0.0
    %516 = vmatpush1.msra.mxu0 %v206
    %517 = vmatprep.subr.mxu0 0.0
    %518 = vmatpush1.msra.mxu0 %v207
    %519 = vmatprep.subr.mxu0 0.0
    %520 = vmatpush1.msra.mxu0 %v208
    %521 = vmatprep.subr.mxu0 0.0
    %522 = vmatpush1.msra.mxu0 %v209
    %523 = vmatprep.subr.mxu0 0.0
    %524 = vmatpush1.msra.mxu0 %v210
    %525 = vmatprep.subr.mxu0 0.0
    %526 = vmatpush1.msra.mxu0 %v211
    %527 = vmatprep.subr.mxu0 0.0
    %528 = vmatpush1.msra.mxu0 %v212
    %529 = vmatprep.subr.mxu0 0.0
    %530 = vmatpush1.msra.mxu0 %v213
    %531 = vmatprep.subr.mxu0 0.0
    %532 = vmatpush1.msra.mxu0 %v214
    %533 = vmatprep.subr.mxu0 0.0
    %534 = vmatpush1.msra.mxu0 %v215
    %535 = vmatprep.subr.mxu0 0.0
    %536 = vmatpush1.msra.mxu0 %v216
    %537 = vmatprep.subr.mxu0 0.0
    %538 = vmatpush1.msra.mxu0 0.0
    %539 = vmatprep.subr.mxu0 0.0
    %540 = vmatpush1.msra.mxu0 0.0
    %541 = vmatprep.subr.mxu0 0.0
    %542 = vmatpush1.msra.mxu0 0.0
    %543 = vmatprep.subr.mxu0 0.0
    %544 = vmatpush1.msra.mxu0 0.0
    %545 = vmatprep.subr.mxu0 0.0
    %546 = vmatpush1.msra.mxu0 0.0
    %547 = vmatprep.subr.mxu0 0.0
    %548 = vmatpush1.msra.mxu0 0.0
    %549 = vmatprep.subr.mxu0 0.0
    %550 = vmatpush1.msra.mxu0 0.0
    %551 = vmatprep.subr.mxu0 0.0
    %552 = vmatpush1.msra.mxu0 0.0
    %553 = vmatprep.subr.mxu0 0.0
    %554 = vmatpush1.msra.mxu0 0.0
    %555 = vmatprep.subr.mxu0 0.0
    %556 = vmatpush1.msra.mxu0 0.0
    %557 = vmatprep.subr.mxu0 0.0
    %558 = vmatpush1.msra.mxu0 0.0
    %559 = vmatprep.subr.mxu0 0.0
    %560 = vmatpush1.msra.mxu0 0.0
    %561 = vmatprep.subr.mxu0 0.0
    %562 = vmatpush1.msra.mxu0 0.0
    %563 = vmatprep.subr.mxu0 0.0
    %564 = vmatpush1.msra.mxu0 0.0
    %565 = vmatprep.subr.mxu0 0.0
    %566 = vmatpush1.msra.mxu0 0.0
    %567 = vmatprep.subr.mxu0 0.0
    %568 = vmatpush1.msra.mxu0 0.0
    %569 = vmatprep.mubr.f32.mxu0 0.0
    %570 = vmatmul.mubr.f32.gmra.mrb[0].mxu0 %v504
    %v571 = vpop.f32.mrb[0].mxu0
    %v572 = vadd.f32 0.0, %v571
    %v573 = vpop.f32.mrb[0].mxu0
    %574 = vdwg.mxu0
    %v575 = vadd.f32 %v187, %v572
    %v576 = vtanh.pop %v575
    %577 = vmatprep.subr.mxu0 0.0
    %578 = vmatpush1.msra.mxu0 %v201
    %579 = vmatprep.subr.mxu0 0.0
    %580 = vmatpush1.msra.mxu0 %v202
    %581 = vmatprep.subr.mxu0 0.0
    %582 = vmatpush1.msra.mxu0 %v203
    %583 = vmatprep.subr.mxu0 0.0
    %584 = vmatpush1.msra.mxu0 %v204
    %585 = vmatprep.subr.mxu0 0.0
    %586 = vmatpush1.msra.mxu0 %v205
    %587 = vmatprep.subr.mxu0 0.0
    %588 = vmatpush1.msra.mxu0 %v206
    %589 = vmatprep.subr.mxu0 0.0
    %590 = vmatpush1.msra.mxu0 %v207
    %591 = vmatprep.subr.mxu0 0.0
    %592 = vmatpush1.msra.mxu0 %v208
    %593 = vmatprep.subr.mxu0 0.0
    %594 = vmatpush1.msra.mxu0 %v209
    %595 = vmatprep.subr.mxu0 0.0
    %596 = vmatpush1.msra.mxu0 %v210
    %597 = vmatprep.subr.mxu0 0.0
    %598 = vmatpush1.msra.mxu0 %v211
    %599 = vmatprep.subr.mxu0 0.0
    %600 = vmatpush1.msra.mxu0 %v212
    %601 = vmatprep.subr.mxu0 0.0
    %602 = vmatpush1.msra.mxu0 %v213
    %603 = vmatprep.subr.mxu0 0.0
    %604 = vmatpush1.msra.mxu0 %v214
    %605 = vmatprep.subr.mxu0 0.0
    %606 = vmatpush1.msra.mxu0 %v215
    %607 = vmatprep.subr.mxu0 0.0
    %608 = vmatpush1.msra.mxu0 %v216
    %609 = vmatprep.subr.mxu0 0.0
    %610 = vmatpush1.msra.mxu0 0.0
    %611 = vmatprep.subr.mxu0 0.0
    %612 = vmatpush1.msra.mxu0 0.0
    %613 = vmatprep.subr.mxu0 0.0
    %614 = vmatpush1.msra.mxu0 0.0
    %615 = vmatprep.subr.mxu0 0.0
    %616 = vmatpush1.msra.mxu0 0.0
    %617 = vmatprep.subr.mxu0 0.0
    %618 = vmatpush1.msra.mxu0 0.0
    %619 = vmatprep.subr.mxu0 0.0
    %620 = vmatpush1.msra.mxu0 0.0
    %621 = vmatprep.subr.mxu0 0.0
    %622 = vmatpush1.msra.mxu0 0.0
    %623 = vmatprep.subr.mxu0 0.0
    %624 = vmatpush1.msra.mxu0 0.0
    %625 = vmatprep.subr.mxu0 0.0
    %626 = vmatpush1.msra.mxu0 0.0
    %627 = vmatprep.subr.mxu0 0.0
    %628 = vmatpush1.msra.mxu0 0.0
    %629 = vmatprep.subr.mxu0 0.0
    %630 = vmatpush1.msra.mxu0 0.0
    %631 = vmatprep.subr.mxu0 0.0
    %632 = vmatpush1.msra.mxu0 0.0
    %633 = vmatprep.subr.mxu0 0.0
    %634 = vmatpush1.msra.mxu0 0.0
    %635 = vmatprep.subr.mxu0 0.0
    %636 = vmatpush1.msra.mxu0 0.0
    %637 = vmatprep.subr.mxu0 0.0
    %638 = vmatpush1.msra.mxu0 0.0
    %639 = vmatprep.subr.mxu0 0.0
    %640 = vmatpush1.msra.mxu0 0.0
    %641 = vmatprep.mubr.f32.mxu0 0.0
    %642 = vmatmul.mubr.f32.gmra.mrb[0].mxu0 %v576
    %v643 = vpop.f32.mrb[0].mxu0
    %v644 = vadd.f32 0.0, %v643
    %v645 = vpop.f32.mrb[0].mxu0
    %646 = vdwg.mxu0
    %v647 = vadd.f32 %v192, %v644
    %v648 = vtanh.pop %v647
    %649 = vmatprep.subr.mxu0 0.0
    %650 = vmatpush1.msra.mxu0 %v201
    %651 = vmatprep.subr.mxu0 0.0
    %652 = vmatpush1.msra.mxu0 %v202
    %653 = vmatprep.subr.mxu0 0.0
    %654 = vmatpush1.msra.mxu0 %v203
    %655 = vmatprep.subr.mxu0 0.0
    %656 = vmatpush1.msra.mxu0 %v204
    %657 = vmatprep.subr.mxu0 0.0
    %658 = vmatpush1.msra.mxu0 %v205
    %659 = vmatprep.subr.mxu0 0.0
    %660 = vmatpush1.msra.mxu0 %v206
    %661 = vmatprep.subr.mxu0 0.0
    %662 = vmatpush1.msra.mxu0 %v207
    %663 = vmatprep.subr.mxu0 0.0
    %664 = vmatpush1.msra.mxu0 %v208
    %665 = vmatprep.subr.mxu0 0.0
    %666 = vmatpush1.msra.mxu0 %v209
    %667 = vmatprep.subr.mxu0 0.0
    %668 = vmatpush1.msra.mxu0 %v210
    %669 = vmatprep.subr.mxu0 0.0
    %670 = vmatpush1.msra.mxu0 %v211
    %671 = vmatprep.subr.mxu0 0.0
    %672 = vmatpush1.msra.mxu0 %v212
    %673 = vmatprep.subr.mxu0 0.0
    %674 = vmatpush1.msra.mxu0 %v213
    %675 = vmatprep.subr.mxu0 0.0
    %676 = vmatpush1.msra.mxu0 %v214
    %677 = vmatprep.subr.mxu0 0.0
    %678 = vmatpush1.msra.mxu0 %v215
    %679 = vmatprep.subr.mxu0 0.0
    %680 = vmatpush1.msra.mxu0 %v216
    %681 = vmatprep.subr.mxu0 0.0
    %682 = vmatpush1.msra.mxu0 0.0
    %683 = vmatprep.subr.mxu0 0.0
    %684 = vmatpush1.msra.mxu0 0.0
    %685 = vmatprep.subr.mxu0 0.0
    %686 = vmatpush1.msra.mxu0 0.0
    %687 = vmatprep.subr.mxu0 0.0
    %688 = vmatpush1.msra.mxu0 0.0
    %689 = vmatprep.subr.mxu0 0.0
    %690 = vmatpush1.msra.mxu0 0.0
    %691 = vmatprep.subr.mxu0 0.0
    %692 = vmatpush1.msra.mxu0 0.0
    %693 = vmatprep.subr.mxu0 0.0
    %694 = vmatpush1.msra.mxu0 0.0
    %695 = vmatprep.subr.mxu0 0.0
    %696 = vmatpush1.msra.mxu0 0.0
    %697 = vmatprep.subr.mxu0 0.0
    %698 = vmatpush1.msra.mxu0 0.0
    %699 = vmatprep.subr.mxu0 0.0
    %700 = vmatpush1.msra.mxu0 0.0
    %701 = vmatprep.subr.mxu0 0.0
    %702 = vmatpush1.msra.mxu0 0.0
    %703 = vmatprep.subr.mxu0 0.0
    %704 = vmatpush1.msra.mxu0 0.0
    %705 = vmatprep.subr.mxu0 0.0
    %706 = vmatpush1.msra.mxu0 0.0
    %707 = vmatprep.subr.mxu0 0.0
    %708 = vmatpush1.msra.mxu0 0.0
    %709 = vmatprep.subr.mxu0 0.0
    %710 = vmatpush1.msra.mxu0 0.0
    %711 = vmatprep.subr.mxu0 0.0
    %712 = vmatpush1.msra.mxu0 0.0
    %713 = vmatprep.mubr.f32.mxu0 0.0
    %714 = vmatmul.mubr.f32.gmra.mrb[0].mxu0 %v648
    %v715 = vpop.f32.mrb[0].mxu0
    %v716 = vadd.f32 0.0, %v715
    %v717 = vpop.f32.mrb[0].mxu0
    %718 = vdwg.mxu0
    %v719 = vadd.f32 %v197, %v716
    %v720 = vtanh.pop %v719
    %v721 = vld [vmem:[#allocation6] sm:$0xff]
    %v722 = vld [vmem:[#allocation6 + $0x8] sm:$0xff]
    %v723 = vld [vmem:[#allocation6 + $0x10] sm:$0xff]
    %v724 = vld [vmem:[#allocation6 + $0x18] sm:$0xff]
    %v725 = vld [vmem:[#allocation6 + $0x20] sm:$0xff]
    %v726 = vld [vmem:[#allocation6 + $0x28] sm:$0xff]
    %v727 = vld [vmem:[#allocation6 + $0x30] sm:$0xff]
    %v728 = vld [vmem:[#allocation6 + $0x38] sm:$0xff]
    %v729 = vld [vmem:[#allocation6 + $0x40] sm:$0xff]
    %v730 = vld [vmem:[#allocation6 + $0x48] sm:$0xff]
    %v731 = vld [vmem:[#allocation6 + $0x50] sm:$0xff]
    %v732 = vld [vmem:[#allocation6 + $0x58] sm:$0xff]
    %v733 = vld [vmem:[#allocation6 + $0x60] sm:$0xff]
    %v734 = vld [vmem:[#allocation6 + $0x68] sm:$0xff]
    %v735 = vld [vmem:[#allocation6 + $0x70] sm:$0xff]
    %v736 = vld [vmem:[#allocation6 + $0x78] sm:$0xff]
    %v737 = vld [vmem:[%s5] sm:$0x1]
    %v739 = vlaneseq
    %v740 = vshrl.u32 %v739, 7
    %v741 = vsub.s32 0, %v740
    %v742 = vrot.slane %v737, %v741
    %744 = vmatprep.subr.mxu0 0.0
    %745 = vmatpush1.msra.mxu0 %v721
    %746 = vmatprep.subr.mxu0 0.0
    %747 = vmatpush1.msra.mxu0 %v722
    %748 = vmatprep.subr.mxu0 0.0
    %749 = vmatpush1.msra.mxu0 %v723
    %750 = vmatprep.subr.mxu0 0.0
    %751 = vmatpush1.msra.mxu0 %v724
    %752 = vmatprep.subr.mxu0 0.0
    %753 = vmatpush1.msra.mxu0 %v725
    %754 = vmatprep.subr.mxu0 0.0
    %755 = vmatpush1.msra.mxu0 %v726
    %756 = vmatprep.subr.mxu0 0.0
    %757 = vmatpush1.msra.mxu0 %v727
    %758 = vmatprep.subr.mxu0 0.0
    %759 = vmatpush1.msra.mxu0 %v728
    %760 = vmatprep.subr.mxu0 0.0
    %761 = vmatpush1.msra.mxu0 %v729
    %762 = vmatprep.subr.mxu0 0.0
    %763 = vmatpush1.msra.mxu0 %v730
    %764 = vmatprep.subr.mxu0 0.0
    %765 = vmatpush1.msra.mxu0 %v731
    %766 = vmatprep.subr.mxu0 0.0
    %767 = vmatpush1.msra.mxu0 %v732
    %768 = vmatprep.subr.mxu0 0.0
    %769 = vmatpush1.msra.mxu0 %v733
    %770 = vmatprep.subr.mxu0 0.0
    %771 = vmatpush1.msra.mxu0 %v734
    %772 = vmatprep.subr.mxu0 0.0
    %773 = vmatpush1.msra.mxu0 %v735
    %774 = vmatprep.subr.mxu0 0.0
    %775 = vmatpush1.msra.mxu0 %v736
    %776 = vmatprep.subr.mxu0 0.0
    %777 = vmatpush1.msra.mxu0 0.0
    %778 = vmatprep.subr.mxu0 0.0
    %779 = vmatpush1.msra.mxu0 0.0
    %780 = vmatprep.subr.mxu0 0.0
    %781 = vmatpush1.msra.mxu0 0.0
    %782 = vmatprep.subr.mxu0 0.0
    %783 = vmatpush1.msra.mxu0 0.0
    %784 = vmatprep.subr.mxu0 0.0
    %785 = vmatpush1.msra.mxu0 0.0
    %786 = vmatprep.subr.mxu0 0.0
    %787 = vmatpush1.msra.mxu0 0.0
    %788 = vmatprep.subr.mxu0 0.0
    %789 = vmatpush1.msra.mxu0 0.0
    %790 = vmatprep.subr.mxu0 0.0
    %791 = vmatpush1.msra.mxu0 0.0
    %792 = vmatprep.subr.mxu0 0.0
    %793 = vmatpush1.msra.mxu0 0.0
    %794 = vmatprep.subr.mxu0 0.0
    %795 = vmatpush1.msra.mxu0 0.0
    %796 = vmatprep.subr.mxu0 0.0
    %797 = vmatpush1.msra.mxu0 0.0
    %798 = vmatprep.subr.mxu0 0.0
    %799 = vmatpush1.msra.mxu0 0.0
    %800 = vmatprep.subr.mxu0 0.0
    %801 = vmatpush1.msra.mxu0 0.0
    %802 = vmatprep.subr.mxu0 0.0
    %803 = vmatpush1.msra.mxu0 0.0
    %804 = vmatprep.subr.mxu0 0.0
    %805 = vmatpush1.msra.mxu0 0.0
    %806 = vmatprep.subr.mxu0 0.0
    %807 = vmatpush1.msra.mxu0 0.0
    %808 = vmatprep.mubr.f32.mxu0 0.0
    %809 = vmatmul.mubr.f32.gmra.mrb[0].mxu0 %v720
    %v810 = vpop.f32.mrb[0].mxu0
    %v811 = vadd.f32 %v742, %v810
    %v812 = vpop.f32.mrb[0].mxu0
    %813 = vdwg.mxu0
    %814 = vst [vmem:[%s6] sm:$0xff] %v811
    // Predicated region
    $region38: #{rnn_label_forward.1} parent=1 // pred_check
      _
    $region39: #{rnn_label_forward.1} parent=1 // pred_check_branch
      %816 = sbr.rel (0) target = $region41
    $region40: #{rnn_label_forward.1} parent=1 // pred_region
      _
    $region41: #{rnn_label_forward.1} parent=1 // pred_fallthru
      _
    // Predicated region
    $region42: #{rnn_label_forward.1} parent=1 // pred_check
      _
    $region43: #{rnn_label_forward.1} parent=1 // pred_check_branch
      %818 = sbr.rel (0) target = $region45
    $region44: #{rnn_label_forward.1} parent=1 // pred_region
      _
    $region45: #{rnn_label_forward.1} parent=1 // pred_fallthru
      _
    %819 = vsyncpa [#allocation3], 1
    %820 = vsyncpa [#allocation5], 1

</llo_original>
